<compile_context>
chip_gen: v7x
topology: tpu7x:2x2x1
jax: 0.10.0
libtpu: 0.0.40
codegen_flags: <defaults>
</compile_context>

<pallas_src>
import math

import jax
import jax.numpy as jnp
import numpy as np
from jax import lax
from jax.experimental import pallas as pl
from jax.experimental.pallas import tpu as pltpu


def _round_up(a, b):
    return ((a + b - 1) // b) * b


def conv2d_forward(x, weight, bias, gamma, beta, *, eps=1e-5, tile_rows=1024,
                   vmem_budget_bytes=6 * 1024 * 1024):
    """Forward of conv2d_: 1x1 conv + BatchNorm2d (batch stats) + ReLU.

    x:      (B, d1, d2, Cin) float32
    weight: (Cout, Cin)  -- the (Cout, Cin, 1, 1) conv weight, squeezed
    bias:   (Cout,)
    gamma, beta: (Cout,) -- BatchNorm affine params
    returns (B, d1, d2, Cout) float32
    """
    B, d1, d2, cin = x.shape
    cout = weight.shape[0]
    M = B * d1 * d2

    # Positions packed per lane-row so both the packed input row (P*Cin) and
    # packed output row (P*Cout) are multiples of 128 lanes: fully dense
    # vector loads/stores and NHWC-flat memory order (zero transposes).
    # NOTE: this inflates MXU flops by P; for the power-of-two channel counts
    # this module uses, the passes stay HBM-bandwidth-bound on v5e/v6e/v7x.
    P = math.lcm(128 // math.gcd(128, cin), 128 // math.gcd(128, cout))
    Lin, Lout = P * cin, P * cout

    Mp = _round_up(M, P)
    xf = x.reshape(-1).astype(jnp.float32)
    if Mp != M:
        # TODO(synk): mask the ragged sub-row tail in-kernel instead of this
        # one-off pad copy (only taken when M % P != 0; demo hits the free path).
        xf = jnp.pad(xf, (0, (Mp - M) * cin))
    R = Mp // P
    xp = xf.reshape(R, Lin)        # free reshape: identical memory order to NHWC

    # Row-tile size: multiple of 8 sublanes, sized so double-buffered
    # in+out blocks stay well under every generation's scoped-VMEM default.
    cap = max(8, ((vmem_budget_bytes // (2 * 4 * (Lin + Lout))) // 8) * 8)
    tile_r = min(int(tile_rows), cap)
    tile_r = R if R <= tile_r else tile_r          # full-dim block for tiny R
    nb = pl.cdiv(R, tile_r)
    needs_mask = (nb * tile_r != R)

    w = weight.astype(jnp.float32)                  # (Cout, Cin)
    eye_p = jnp.eye(P, dtype=jnp.float32)
    w_big = jnp.kron(eye_p, w.T)                    # (Lin, Lout) block-diagonal

    # ---------------- Pass 1: sums of u = x @ Wbig per packed lane (no bias;
    # masked / zero-padded positions contribute exactly nothing).
    def stats_kernel(x_ref, w_ref, s1_ref, s2_ref):
        i = pl.program_id(0)

        @pl.when(i == 0)
        def _():
            s1_ref[...] = jnp.zeros_like(s1_ref)
            s2_ref[...] = jnp.zeros_like(s2_ref)

        xb = x_ref[...]
        if needs_mask:
            rows = i * tile_r + lax.broadcasted_iota(jnp.int32, (tile_r, 1), 0)
            xb = jnp.where(rows < R, xb, 0.0)       # OOB rows are garbage, mask them
        u = jnp.dot(xb, w_ref[...], preferred_element_type=jnp.float32)
        # Wide (1, Lout) lane-dense accumulators living directly in the
        # resident output block: sublane reduce only, no lane reduce here.
        s1_ref[...] += jnp.sum(u, axis=0, keepdims=True)
        s2_ref[...] += jnp.sum(u * u, axis=0, keepdims=True)

    stats_cost = pl.CostEstimate(
        flops=int(2 * nb * tile_r * Lin * Lout + 4 * nb * tile_r * Lout),
        transcendentals=0,
        bytes_accessed=int(R * Lin * 4 + Lin * Lout * 4 + 2 * Lout * 4))

    s1_big, s2_big = pl.pallas_call(
        stats_kernel,
        out_shape=(jax.ShapeDtypeStruct((1, Lout), jnp.float32),
                   jax.ShapeDtypeStruct((1, Lout), jnp.float32)),
        grid=(nb,),
        in_specs=[pl.BlockSpec((tile_r, Lin), lambda i: (i, 0)),
                  pl.BlockSpec((Lin, Lout), lambda i: (0, 0))],
        out_specs=(pl.BlockSpec((1, Lout), lambda i: (0, 0)),
                   pl.BlockSpec((1, Lout), lambda i: (0, 0))),
        compiler_params=pltpu.CompilerParams(
            dimension_semantics=("arbitrary",)),
        cost_estimate=stats_cost,
    )(xp, w_big)

    # ---------------- Tiny per-channel math (Cout scalars) in plain JAX glue.
    b = bias.astype(jnp.float32)
    g = gamma.astype(jnp.float32)
    bt = beta.astype(jnp.float32)
    m_f = jnp.float32(M)

    s1 = jnp.sum(s1_big.reshape(P, cout), axis=0)    # sum_m (w_c . x_m)
    s2 = jnp.sum(s2_big.reshape(P, cout), axis=0)    # sum_m (w_c . x_m)^2

    sum_z = s1 + m_f * b                             # z = u + bias
    ssq_z = s2 + 2.0 * b * s1 + m_f * b * b
    mean = sum_z / m_f
    var = jnp.maximum(ssq_z / m_f - mean * mean, 0.0)   # biased batch variance
    scale = g / jnp.sqrt(var + eps)
    shift = bt - mean * scale

    # Fold BN into the (packed, block-diagonal) conv weight and bias.
    w_f_big = jnp.kron(eye_p, (scale[:, None] * w).T)            # (Lin, Lout)
    b_f_big = jnp.tile(scale * b + shift, P).reshape(1, Lout)    # (1, Lout)

    # ---------------- Pass 2: y = relu(x @ Wfold + bfold), NHWC-flat output.
    def conv_bn_relu_kernel(x_ref, w_ref, b_ref, y_ref):
        u = jnp.dot(x_ref[...], w_ref[...], preferred_element_type=jnp.float32)
        y_ref[...] = jnp.maximum(u + b_ref[...], 0.0)

    pass2_cost = pl.CostEstimate(
        flops=int(2 * nb * tile_r * Lin * Lout + nb * tile_r * Lout),
        transcendentals=0,
        bytes_accessed=int(R * (Lin + Lout) * 4 + Lin * Lout * 4 + Lout * 4))

    yp = pl.pallas_call(
        conv_bn_relu_kernel,
        out_shape=jax.ShapeDtypeStruct((R, Lout), jnp.float32),
        grid=(nb,),
        in_specs=[pl.BlockSpec((tile_r, Lin), lambda i: (i, 0)),
                  pl.BlockSpec((Lin, Lout), lambda i: (0, 0)),
                  pl.BlockSpec((1, Lout), lambda i: (0, 0))],
        out_specs=pl.BlockSpec((tile_r, Lout), lambda i: (i, 0)),
        # On v7x, consider pltpu.CORE_PARALLEL / an explicit 2-way core split
        # here; kept portable ("parallel") for 1-TC v5e/v6e chips.
        compiler_params=pltpu.CompilerParams(
            dimension_semantics=("parallel",)),
        cost_estimate=pass2_cost,
    )(xp, w_f_big, b_f_big)

    yf = yp.reshape(-1)                 # NHWC flat order already
    if Mp != M:
        yf = yf[: M * cout]
    return yf.reshape(B, d1, d2, cout)  # pure metadata reshape, no transpose


if __name__ == "__main__":
    key = jax.random.PRNGKey(0)
    kx, kw = jax.random.split(key)

    # Small shapes consistent with the module's usage: (batch, seq, vertices, Cin)
    B, d1, d2 = 2, 8, 16
    cin, cout = 4, 8

    x = jax.random.normal(kx, (B, d1, d2, cin), dtype=jnp.float32)

    # Deterministic parameter init matching the module's __init__:
    # xavier_uniform_ on the (Cout, Cin, 1, 1) conv weight, zero bias,
    # BatchNorm2d default gamma=1 / beta=0.
    bound = math.sqrt(6.0 / (cin + cout))
    weight = jax.random.uniform(kw, (cout, cin), jnp.float32, -bound, bound)
    bias = jnp.zeros((cout,), jnp.float32)
    gamma = jnp.ones((cout,), jnp.float32)
    beta = jnp.zeros((cout,), jnp.float32)

    y = conv2d_forward(x, weight, bias, gamma, beta)
    y = jax.block_until_ready(y)

    # Float64 numpy reference of the same forward semantics.
    xn = np.asarray(x, dtype=np.float64).reshape(-1, cin)
    wn = np.asarray(weight, dtype=np.float64)
    zn = xn @ wn.T + np.asarray(bias, dtype=np.float64)
    mn = zn.mean(axis=0)
    vn = zn.var(axis=0)
    yn = np.maximum(
        (zn - mn) / np.sqrt(vn + 1e-5) * np.asarray(gamma, np.float64)
        + np.asarray(beta, np.float64), 0.0).reshape(B, d1, d2, cout)

    assert y.shape == (B, d1, d2, cout)
    assert np.allclose(np.asarray(y), yn, atol=1e-3, rtol=1e-3), \
        "mismatch vs reference"

    print("KERNEL_OK")
</pallas_src>

<mosaic_0001>
module attributes {stable_mosaic.version = 11 : i64} {
  func.func @stats_kernel(%arg0: i32, %arg1: memref<8x128xf32, #tpu.memory_space<vmem>>, %arg2: memref<128x256xf32, #tpu.memory_space<vmem>>, %arg3: memref<1x256xf32, #tpu.memory_space<vmem>>, %arg4: memref<1x256xf32, #tpu.memory_space<vmem>>) attributes {dimension_semantics = [#tpu.dimension_semantics<arbitrary>], iteration_bounds = array<i64: 1>, scalar_prefetch = 0 : i64, scratch_operands = 0 : i64, tpu.core_type = #tpu.core_type<tc>, window_params = [{transform_indices = @transform_0, window_bounds = array<i64: 8, 128>}, {pipeline_mode = #tpu.pipeline_mode<synchronous>, transform_indices = @transform_1, window_bounds = array<i64: 128, 256>}, {pipeline_mode = #tpu.pipeline_mode<synchronous>, transform_indices = @transform_2, window_bounds = array<i64: 1, 256>}, {pipeline_mode = #tpu.pipeline_mode<synchronous>, transform_indices = @transform_3, window_bounds = array<i64: 1, 256>}]} {
    %c0_i32 = arith.constant 0 : i32
    %0 = arith.cmpi eq, %arg0, %c0_i32 : i32
    %1 = arith.extui %0 : i1 to i32
    %c0_i32_0 = arith.constant 0 : i32
    %2 = arith.cmpi ne, %1, %c0_i32_0 : i32
    scf.if %2 {
      %cst_14 = arith.constant 0.000000e+00 : f32
      %17 = vector.broadcast %cst_14 : f32 to vector<1x256xf32>
      %c0_15 = arith.constant 0 : index
      %c0_16 = arith.constant 0 : index
      %18 = vector.load %arg3[%c0_15, %c0_16] : memref<1x256xf32, #tpu.memory_space<vmem>>, vector<1x256xf32>
      tpu.vector_store %arg3[%c0_15, %c0_16], %17 {strides = array<i32>} : memref<1x256xf32, #tpu.memory_space<vmem>>, vector<1x256xf32>,
      %cst_17 = arith.constant 0.000000e+00 : f32
      %19 = vector.broadcast %cst_17 : f32 to vector<1x256xf32>
      %c0_18 = arith.constant 0 : index
      %c0_19 = arith.constant 0 : index
      %20 = vector.load %arg4[%c0_18, %c0_19] : memref<1x256xf32, #tpu.memory_space<vmem>>, vector<1x256xf32>
      tpu.vector_store %arg4[%c0_18, %c0_19], %19 {strides = array<i32>} : memref<1x256xf32, #tpu.memory_space<vmem>>, vector<1x256xf32>,
    } else {
    }
    %c0 = arith.constant 0 : index
    %c0_1 = arith.constant 0 : index
    %3 = vector.load %arg1[%c0, %c0_1] : memref<8x128xf32, #tpu.memory_space<vmem>>, vector<8x128xf32>
    %c0_2 = arith.constant 0 : index
    %c0_3 = arith.constant 0 : index
    %4 = vector.load %arg2[%c0_2, %c0_3] : memref<128x256xf32, #tpu.memory_space<vmem>>, vector<128x256xf32>
    %cst = arith.constant dense<0.000000e+00> : vector<8x256xf32>
    %5 = tpu.matmul %3, %4, %cst {dimension_numbers = #tpu.dot_dimension_numbers<[1], [0], [0], [1], [0, 0, 1, 1], [], []>} : vector<8x128xf32>, vector<128x256xf32>, vector<8x256xf32> -> vector<8x256xf32>
    %c0_4 = arith.constant 0 : index
    %c0_5 = arith.constant 0 : index
    %6 = vector.load %arg3[%c0_4, %c0_5] : memref<1x256xf32, #tpu.memory_space<vmem>>, vector<1x256xf32>
    %cst_6 = arith.constant dense<0.000000e+00> : vector<256xf32>
    %7 = vector.multi_reduction <add>, %5, %cst_6 [0] : vector<8x256xf32> to vector<256xf32>
    %8 = vector.shape_cast %7 : vector<256xf32> to vector<1x256xf32>
    %9 = arith.addf %6, %8 : vector<1x256xf32>
    %c0_7 = arith.constant 0 : index
    %c0_8 = arith.constant 0 : index
    %10 = vector.load %arg3[%c0_7, %c0_8] : memref<1x256xf32, #tpu.memory_space<vmem>>, vector<1x256xf32>
    tpu.vector_store %arg3[%c0_7, %c0_8], %9 {strides = array<i32>} : memref<1x256xf32, #tpu.memory_space<vmem>>, vector<1x256xf32>,
    %c0_9 = arith.constant 0 : index
    %c0_10 = arith.constant 0 : index
    %11 = vector.load %arg4[%c0_9, %c0_10] : memref<1x256xf32, #tpu.memory_space<vmem>>, vector<1x256xf32>
    %12 = arith.mulf %5, %5 : vector<8x256xf32>
    %cst_11 = arith.constant dense<0.000000e+00> : vector<256xf32>
    %13 = vector.multi_reduction <add>, %12, %cst_11 [0] : vector<8x256xf32> to vector<256xf32>
    %14 = vector.shape_cast %13 : vector<256xf32> to vector<1x256xf32>
    %15 = arith.addf %11, %14 : vector<1x256xf32>
    %c0_12 = arith.constant 0 : index
    %c0_13 = arith.constant 0 : index
    %16 = vector.load %arg4[%c0_12, %c0_13] : memref<1x256xf32, #tpu.memory_space<vmem>>, vector<1x256xf32>
    tpu.vector_store %arg4[%c0_12, %c0_13], %15 {strides = array<i32>} : memref<1x256xf32, #tpu.memory_space<vmem>>, vector<1x256xf32>,
    return
  }
  func.func @transform_0(%arg0: i32) -> (i32, i32) {
    %c0_i32 = arith.constant 0 : i32
    %c0_i32_0 = arith.constant 0 : i32
    return %arg0, %c0_i32 : i32, i32
  }
  func.func @transform_1(%arg0: i32) -> (i32, i32) {
    %c0_i32 = arith.constant 0 : i32
    %c0_i32_0 = arith.constant 0 : i32
    %c0_i32_1 = arith.constant 0 : i32
    return %c0_i32, %c0_i32_0 : i32, i32
  }
  func.func @transform_2(%arg0: i32) -> (i32, i32) {
    %c0_i32 = arith.constant 0 : i32
    %c0_i32_0 = arith.constant 0 : i32
    %c0_i32_1 = arith.constant 0 : i32
    return %c0_i32, %c0_i32_0 : i32, i32
  }
  func.func @transform_3(%arg0: i32) -> (i32, i32) {
    %c0_i32 = arith.constant 0 : i32
    %c0_i32_0 = arith.constant 0 : i32
    %c0_i32_1 = arith.constant 0 : i32
    return %c0_i32, %c0_i32_0 : i32, i32
  }
}

</mosaic_0001>

<llo_original>
// kernel: tpu_custom_call.1
$region0: #{tpu_custom_call.1}
  #allocation0 [shape = 'u32[]', space=smem, size = 0x4, offset = 0x4, fixed_abs, tag = 'smem constant byte address 0x4 - core index']
  #allocation1 [shape = 'u32[144,128]{1,0:T(1,128)}', space=vmem, size = 0x12000, scoped, tag = 'internal scratch']
  %s0 = inlined_call_operand.hbm [shape: f32[8,128], index: 0, kind: input, shape index: {}]
  %s1 = inlined_call_operand.hbm [shape: f32[128,256], index: 1, kind: input, shape index: {}]
  %s2 = inlined_call_operand.hbm [shape: f32[1,256], index: 2, kind: output, shape index: {0}]
  %s3 = inlined_call_operand.hbm [shape: f32[1,256], index: 3, kind: output, shape index: {1}]
  %4 = xla_tuple %s2, %s3
  %s5 = sld [smem:[#allocation0]]
  $region38: #{tpu_custom_call.1} parent=0
    _
  %s7 = ssub.s32 1, %s5
  %s8 = scalar_select 0, %s7, %s5
  $region1: #{tpu_custom_call.1} parent=0
    #allocation2 [shape = 'u8[4096]{0}', space=vmem, size = 0x1000, scoped, tag = 'input window, operand 0, single buffered']
    #allocation3 [shape = 's32[1]{0}', space=sflag, size = 0x4, scoped, tag = 'scoped memory for tpu_custom_call.1']
    #allocation4 [shape = 's32[1]{0}', space=sflag, size = 0x4, scoped, tag = 'scoped memory for tpu_custom_call.1']
    #allocation5 [shape = 'u8[131072]{0}', space=vmem, size = 0x20000, scoped, tag = 'input window, operand 1, single buffered']
    #allocation6 [shape = 's32[1]{0}', space=sflag, size = 0x4, scoped, tag = 'scoped memory for tpu_custom_call.1']
    #allocation7 [shape = 'u8[1024]{0}', space=vmem, size = 0x400, scoped, tag = 'output window, operand 0, single buffered']
    #allocation8 [shape = 'u8[1024]{0}', space=vmem, size = 0x400, scoped, tag = 'output window, operand 1, single buffered']
    #allocation9 [shape = 's32[1]{0}', space=sflag, size = 0x4, scoped, tag = 'scoped memory for tpu_custom_call.1']
    %9 = vsyncpa [#allocation3], 0
    %10 = vsyncpa [#allocation6], 0
    %11 = vsyncpa [#allocation4], 0
    %12 = vsyncpa [#allocation9], 0
    // Predicated region
    $region2: #{tpu_custom_call.1} parent=1 // pred_check
      _
    $region3: #{tpu_custom_call.1} parent=1 // pred_check_branch
      %14 = sbr.rel (0) target = $region5
    $region4: #{tpu_custom_call.1} parent=1 // pred_region
      %s16 = ssub.s32 128, 128
      %17 = vsyncadd [#allocation3], %s16
      %s19 = sshll.u32 [#allocation2], 4
      %s20 = int_to_ptr.vmem [resolvable:$true] %s19
      %22 = dma.hbm_to_vmem [thread:$0]  %s0, 128, %s20, [#allocation3]
    $region5: #{tpu_custom_call.1} parent=1 // pred_fallthru
      _
    // Predicated region
    $region6: #{tpu_custom_call.1} parent=1 // pred_check
      _
    $region7: #{tpu_custom_call.1} parent=1 // pred_check_branch
      %24 = sbr.rel (0) target = $region9
    $region8: #{tpu_custom_call.1} parent=1 // pred_region
      %s26 = ssub.s32 4096, 4096
      %27 = vsyncadd [#allocation6], %s26
      %s28 = sshll.u32 [#allocation5], 4
      %s29 = int_to_ptr.vmem [resolvable:$true] %s28
      %34 = dma.hbm_to_vmem [thread:$0]  %s1, 4096, %s29, [#allocation6], 256, 256, 16
    $region9: #{tpu_custom_call.1} parent=1 // pred_fallthru
      _
    // Predicated region
    $region10: #{tpu_custom_call.1} parent=1 // pred_check
      _
    $region11: #{tpu_custom_call.1} parent=1 // pred_check_branch
      %36 = sbr.rel (0) target = $region13
    $region12: #{tpu_custom_call.1} parent=1 // pred_region
      %37 = dma.done [#allocation3], 128
    $region13: #{tpu_custom_call.1} parent=1 // pred_fallthru
      _
    // Predicated region
    $region14: #{tpu_custom_call.1} parent=1 // pred_check
      _
    $region15: #{tpu_custom_call.1} parent=1 // pred_check_branch
      %39 = sbr.rel (0) target = $region17
    $region16: #{tpu_custom_call.1} parent=1 // pred_region
      %40 = dma.done [#allocation6], 4096
    $region17: #{tpu_custom_call.1} parent=1 // pred_fallthru
      _
    %p41 = scmp.eq.s32.totalorder 0, 0
    // Predicated region
    $region18: #{tpu_custom_call.1} parent=1 // pred_check
      %p42 = pneg %p41
    $region19: #{tpu_custom_call.1} parent=1 // pred_check_branch
      %44 = sbr.rel (%p42) target = $region21
    $region20: #{tpu_custom_call.1} parent=1 // pred_region
      %v45 = vlaneseq
      %vm46 = vcmp.ge.s32.totalorder %v45, 0
      %vm47 = vcmp.lt.s32.totalorder %v45, 256
      %vm48 = vmand %vm46, %vm47
      %49 = vst.msk [vmem:[#allocation7] sm:$0x3] %vm48, 0.0
      %50 = vst.msk [vmem:[#allocation8] sm:$0x3] %vm48, 0.0
    $region21: #{tpu_custom_call.1} parent=1 // pred_fallthru
      _
    %v51 = vld [vmem:[#allocation2] sm:$0xff]
    %v52 = vld [vmem:[#allocation5] sm:$0xff]
    %v53 = vld [vmem:[#allocation5 + $0x8] sm:$0xff]
    %v54 = vld [vmem:[#allocation5 + $0x10] sm:$0xff]
    %v55 = vld [vmem:[#allocation5 + $0x18] sm:$0xff]
    %v56 = vld [vmem:[#allocation5 + $0x20] sm:$0xff]
    %v57 = vld [vmem:[#allocation5 + $0x28] sm:$0xff]
    %v58 = vld [vmem:[#allocation5 + $0x30] sm:$0xff]
    %v59 = vld [vmem:[#allocation5 + $0x38] sm:$0xff]
    %v60 = vld [vmem:[#allocation5 + $0x40] sm:$0xff]
    %v61 = vld [vmem:[#allocation5 + $0x48] sm:$0xff]
    %v62 = vld [vmem:[#allocation5 + $0x50] sm:$0xff]
    %v63 = vld [vmem:[#allocation5 + $0x58] sm:$0xff]
    %v64 = vld [vmem:[#allocation5 + $0x60] sm:$0xff]
    %v65 = vld [vmem:[#allocation5 + $0x68] sm:$0xff]
    %v66 = vld [vmem:[#allocation5 + $0x70] sm:$0xff]
    %v67 = vld [vmem:[#allocation5 + $0x78] sm:$0xff]
    %v68 = vld [vmem:[#allocation5 + $0x80] sm:$0xff]
    %v69 = vld [vmem:[#allocation5 + $0x88] sm:$0xff]
    %v70 = vld [vmem:[#allocation5 + $0x90] sm:$0xff]
    %v71 = vld [vmem:[#allocation5 + $0x98] sm:$0xff]
    %v72 = vld [vmem:[#allocation5 + $0xa0] sm:$0xff]
    %v73 = vld [vmem:[#allocation5 + $0xa8] sm:$0xff]
    %v74 = vld [vmem:[#allocation5 + $0xb0] sm:$0xff]
    %v75 = vld [vmem:[#allocation5 + $0xb8] sm:$0xff]
    %v76 = vld [vmem:[#allocation5 + $0xc0] sm:$0xff]
    %v77 = vld [vmem:[#allocation5 + $0xc8] sm:$0xff]
    %v78 = vld [vmem:[#allocation5 + $0xd0] sm:$0xff]
    %v79 = vld [vmem:[#allocation5 + $0xd8] sm:$0xff]
    %v80 = vld [vmem:[#allocation5 + $0xe0] sm:$0xff]
    %v81 = vld [vmem:[#allocation5 + $0xe8] sm:$0xff]
    %v82 = vld [vmem:[#allocation5 + $0xf0] sm:$0xff]
    %v83 = vld [vmem:[#allocation5 + $0xf8] sm:$0xff]
    %84 = vmatprep.subr.mxu0 %v53
    %85 = vmatpush1.msra.mxu0 %v52
    %86 = vmatprep.subr.mxu0 %v55
    %87 = vmatpush1.msra.mxu0 %v54
    %88 = vmatprep.subr.mxu0 %v57
    %89 = vmatpush1.msra.mxu0 %v56
    %90 = vmatprep.subr.mxu0 %v59
    %91 = vmatpush1.msra.mxu0 %v58
    %92 = vmatprep.subr.mxu0 %v61
    %93 = vmatpush1.msra.mxu0 %v60
    %94 = vmatprep.subr.mxu0 %v63
    %95 = vmatpush1.msra.mxu0 %v62
    %96 = vmatprep.subr.mxu0 %v65
    %97 = vmatpush1.msra.mxu0 %v64
    %98 = vmatprep.subr.mxu0 %v67
    %99 = vmatpush1.msra.mxu0 %v66
    %100 = vmatprep.subr.mxu0 %v69
    %101 = vmatpush1.msra.mxu0 %v68
    %102 = vmatprep.subr.mxu0 %v71
    %103 = vmatpush1.msra.mxu0 %v70
    %104 = vmatprep.subr.mxu0 %v73
    %105 = vmatpush1.msra.mxu0 %v72
    %106 = vmatprep.subr.mxu0 %v75
    %107 = vmatpush1.msra.mxu0 %v74
    %108 = vmatprep.subr.mxu0 %v77
    %109 = vmatpush1.msra.mxu0 %v76
    %110 = vmatprep.subr.mxu0 %v79
    %111 = vmatpush1.msra.mxu0 %v78
    %112 = vmatprep.subr.mxu0 %v81
    %113 = vmatpush1.msra.mxu0 %v80
    %114 = vmatprep.subr.mxu0 %v83
    %115 = vmatpush1.msra.mxu0 %v82
    %116 = vmatprep.subr.mxu0 0.0
    %117 = vmatpush1.msra.mxu0 0.0
    %118 = vmatprep.subr.mxu0 0.0
    %119 = vmatpush1.msra.mxu0 0.0
    %120 = vmatprep.subr.mxu0 0.0
    %121 = vmatpush1.msra.mxu0 0.0
    %122 = vmatprep.subr.mxu0 0.0
    %123 = vmatpush1.msra.mxu0 0.0
    %124 = vmatprep.subr.mxu0 0.0
    %125 = vmatpush1.msra.mxu0 0.0
    %126 = vmatprep.subr.mxu0 0.0
    %127 = vmatpush1.msra.mxu0 0.0
    %128 = vmatprep.subr.mxu0 0.0
    %129 = vmatpush1.msra.mxu0 0.0
    %130 = vmatprep.subr.mxu0 0.0
    %131 = vmatpush1.msra.mxu0 0.0
    %132 = vmatprep.subr.mxu0 0.0
    %133 = vmatpush1.msra.mxu0 0.0
    %134 = vmatprep.subr.mxu0 0.0
    %135 = vmatpush1.msra.mxu0 0.0
    %136 = vmatprep.subr.mxu0 0.0
    %137 = vmatpush1.msra.mxu0 0.0
    %138 = vmatprep.subr.mxu0 0.0
    %139 = vmatpush1.msra.mxu0 0.0
    %140 = vmatprep.subr.mxu0 0.0
    %141 = vmatpush1.msra.mxu0 0.0
    %142 = vmatprep.subr.mxu0 0.0
    %143 = vmatpush1.msra.mxu0 0.0
    %144 = vmatprep.subr.mxu0 0.0
    %145 = vmatpush1.msra.mxu0 0.0
    %146 = vmatprep.subr.mxu0 0.0
    %147 = vmatpush1.msra.mxu0 0.0
    %148 = vmatprep.mubr.f32.mxu0 0.0
    %149 = vmatmul.mubr.f32.gmra.mrb[0].mxu0 %v51
    %v150 = vpop.f32.mrb[0].mxu0
    %v151 = vadd.f32 0.0, %v150
    %v152 = vpop.f32.mrb[0].mxu0
    %v153 = vadd.f32 0.0, %v152
    %154 = vdwg.mxu0
    %v155 = vld [vmem:[#allocation7] sm:$0x3]
    %v156 = vrot.slane %v151, 4
    %v157 = vadd.f32 %v151, %v156
    %v158 = vrot.slane %v157, 2
    %v159 = vadd.f32 %v157, %v158
    %v160 = vrot.slane %v159, 1
    %v161 = vadd.f32 %v159, %v160
    %v162 = vrot.slane %v153, 4
    %v163 = vadd.f32 %v153, %v162
    %v164 = vrot.slane %v163, 2
    %v165 = vadd.f32 %v163, %v164
    %v166 = vrot.slane %v165, 1
    %v167 = vadd.f32 %v165, %v166
    %v170 = vcombine.low %v161, %v167
    %v172 = vunpack.c.l.s4 1966171168
    %v173 = vunpack.c.0.s8 %v172
    %v174 = vlaneseq
    %v175 = vshrl.u32 %v174, 7
    %v176 = vsub.s32 %v173, %v175
    %v177 = vrot.slane %v170, %v176
    %v179 = vunpack.c.l.s4 1966171168
    %v180 = vunpack.c.0.s8 %v179
    %v181 = vlaneseq
    %v182 = vshrl.u32 %v181, 7
    %v183 = vsub.s32 %v180, %v182
    %v184 = vrot.slane %v177, %v183
    %v186 = vadd.f32 %v155, %v184
    %v187 = vlaneseq
    %vm188 = vcmp.ge.s32.totalorder %v187, 0
    %vm189 = vcmp.lt.s32.totalorder %v187, 256
    %vm190 = vmand %vm188, %vm189
    %191 = vst.msk [vmem:[#allocation7] sm:$0x3] %vm190, %v186
    %v192 = vld [vmem:[#allocation8] sm:$0x3]
    %v193 = vmul.f32 %v151, %v151
    %v194 = vmul.f32 %v153, %v153
    %v195 = vrot.slane %v193, 4
    %v196 = vadd.f32 %v193, %v195
    %v197 = vrot.slane %v196, 2
    %v198 = vadd.f32 %v196, %v197
    %v199 = vrot.slane %v198, 1
    %v200 = vadd.f32 %v198, %v199
    %v201 = vrot.slane %v194, 4
    %v202 = vadd.f32 %v194, %v201
    %v203 = vrot.slane %v202, 2
    %v204 = vadd.f32 %v202, %v203
    %v205 = vrot.slane %v204, 1
    %v206 = vadd.f32 %v204, %v205
    %v209 = vcombine.low %v200, %v206
    %v211 = vunpack.c.l.s4 1966171168
    %v212 = vunpack.c.0.s8 %v211
    %v213 = vlaneseq
    %v214 = vshrl.u32 %v213, 7
    %v215 = vsub.s32 %v212, %v214
    %v216 = vrot.slane %v209, %v215
    %v218 = vunpack.c.l.s4 1966171168
    %v219 = vunpack.c.0.s8 %v218
    %v220 = vlaneseq
    %v221 = vshrl.u32 %v220, 7
    %v222 = vsub.s32 %v219, %v221
    %v223 = vrot.slane %v216, %v222
    %v225 = vadd.f32 %v192, %v223
    %226 = vst.msk [vmem:[#allocation8] sm:$0x3] %vm190, %v225
    // Predicated region
    $region22: #{tpu_custom_call.1} parent=1 // pred_check
      _
    $region23: #{tpu_custom_call.1} parent=1 // pred_check_branch
      %228 = sbr.rel (0) target = $region25
    $region24: #{tpu_custom_call.1} parent=1 // pred_region
      %s230 = ssub.s32 32, 32
      %231 = vsyncadd [#allocation4], %s230
      %s233 = sshll.u32 [#allocation7], 4
      %s234 = int_to_ptr.vmem [resolvable:$true] %s233
      %236 = dma.vmem_to_hbm [thread:$0]  %s234, 32, %s2, [#allocation4]
    $region25: #{tpu_custom_call.1} parent=1 // pred_fallthru
      _
    // Predicated region
    $region26: #{tpu_custom_call.1} parent=1 // pred_check
      _
    $region27: #{tpu_custom_call.1} parent=1 // pred_check_branch
      %238 = sbr.rel (0) target = $region29
    $region28: #{tpu_custom_call.1} parent=1 // pred_region
      %s240 = ssub.s32 32, 32
      %241 = vsyncadd [#allocation9], %s240
      %s243 = sshll.u32 [#allocation8], 4
      %s244 = int_to_ptr.vmem [resolvable:$true] %s243
      %246 = dma.vmem_to_hbm [thread:$0]  %s244, 32, %s3, [#allocation9]
    $region29: #{tpu_custom_call.1} parent=1 // pred_fallthru
      _
    // Predicated region
    $region30: #{tpu_custom_call.1} parent=1 // pred_check
      _
    $region31: #{tpu_custom_call.1} parent=1 // pred_check_branch
      %248 = sbr.rel (0) target = $region33
    $region32: #{tpu_custom_call.1} parent=1 // pred_region
      %249 = dma.done [#allocation4], 32
    $region33: #{tpu_custom_call.1} parent=1 // pred_fallthru
      _
    // Predicated region
    $region34: #{tpu_custom_call.1} parent=1 // pred_check
      _
    $region35: #{tpu_custom_call.1} parent=1 // pred_check_branch
      %251 = sbr.rel (0) target = $region37
    $region36: #{tpu_custom_call.1} parent=1 // pred_region
      %252 = dma.done [#allocation9], 32
    $region37: #{tpu_custom_call.1} parent=1 // pred_fallthru
      _
    %253 = vsyncpa [#allocation3], 1
    %254 = vsyncpa [#allocation6], 1
    %255 = vsyncpa [#allocation4], 1
    %256 = vsyncpa [#allocation9], 1

</llo_original>
